<compile_context>
chip_gen: v7x
topology: tpu7x:2x2x1
jax: 0.10.0
libtpu: 0.0.40
codegen_flags: <defaults>
</compile_context>

<pallas_src>
import functools

import jax
import jax.numpy as jnp
from jax import lax
from jax.experimental import pallas as pl
from jax.experimental.pallas import tpu as pltpu

IN_F = 24
HID_F = 48
OUT_F = 4

PACK = 32                  # original rows packed per lane-dense row
PACK_IN = PACK * IN_F      # 768  (K of the kernel matmul)
PACK_OUT = PACK * OUT_F    # 128  (N of the kernel matmul -> full lane width)


def _spatial_transform_kernel(x_ref, w_ref, b_ref, o_ref):
    # x_ref: (tile_g, 768)  packed input rows (32 original rows each)
    # w_ref: (768, 128)     block-diagonal replication of the folded 24x4 weight
    # b_ref: (1, 128)       folded bias tiled 32x
    # o_ref: (tile_g, 128)
    # LeakyReLU(negative_slope=True -> 1.0) is the identity, so no activation here;
    # the two Linear layers are pre-folded in the wrapper (exact).
    o_ref[...] = (
        jnp.dot(x_ref[...], w_ref[...], preferred_element_type=jnp.float32)
        + b_ref[...]
    ).astype(o_ref.dtype)


@functools.partial(jax.jit, static_argnames=("tile_rows",))
def spatial_transform_forward(x, w1, b1, w2, b2, *, tile_rows=1024):
    """Forward pass of `spatial_transform`.

    x:  any shape whose total size is divisible by 24 (mirrors x.reshape(-1, 24)).
    w1: (24, 48), b1: (48,), w2: (48, 4), b2: (4,)   -- weights stored as (in, out).
    tile_rows: packed rows per grid step (each packed row = 32 original rows, so the
               default 1024 processes 32768 original rows per step, ~7.4 MiB VMEM).
    """
    x2 = x.reshape(-1, IN_F).astype(jnp.float32)
    n = x2.shape[0]

    # ---- fold the two linear layers (exact because the activation is identity) ----
    hi = lax.Precision.HIGHEST
    w_fold = jnp.dot(w1, w2, precision=hi).astype(jnp.float32)            # (24, 4)
    b_fold = (jnp.dot(b1, w2, precision=hi) + b2).astype(jnp.float32)     # (4,)

    # ---- lane-dense packing: 32 rows of 24 -> one row of 768 --------------------
    n_pack = pl.cdiv(n, PACK) * PACK
    if n_pack != n:
        # At most PACK-1 rows of padding; no pad at all when n % 32 == 0.
        x2 = jnp.pad(x2, ((0, n_pack - n), (0, 0)))
    n_groups = n_pack // PACK
    xp = x2.reshape(n_groups, PACK_IN)          # free, row-major contiguous

    # Block-diagonal (768, 128): 32 diagonal copies of the folded (24, 4) weight.
    w_bd = jnp.kron(jnp.eye(PACK, dtype=jnp.float32), w_fold)             # (768, 128)
    b_bd = jnp.tile(b_fold, (PACK,)).reshape(1, PACK_OUT)                 # (1, 128)

    # Biggest aligned row tile; for arrays smaller than a tile use the full extent
    # (block dim == full array dim is always a legal block shape).
    tile_g = min(tile_rows, n_groups)
    grid = (pl.cdiv(n_groups, tile_g),)

    cost = pl.CostEstimate(
        flops=2 * n_groups * PACK_IN * PACK_OUT,
        transcendentals=0,
        bytes_accessed=4 * (xp.size + w_bd.size + b_bd.size + n_groups * PACK_OUT),
    )

    out = pl.pallas_call(
        _spatial_transform_kernel,
        out_shape=jax.ShapeDtypeStruct((n_groups, PACK_OUT), jnp.float32),
        grid_spec=pltpu.PrefetchScalarGridSpec(
            num_scalar_prefetch=0,
            grid=grid,
            in_specs=[
                pl.BlockSpec((tile_g, PACK_IN), lambda i: (i, 0)),
                pl.BlockSpec((PACK_IN, PACK_OUT), lambda i: (0, 0)),
                pl.BlockSpec((1, PACK_OUT), lambda i: (0, 0)),
            ],
            out_specs=pl.BlockSpec((tile_g, PACK_OUT), lambda i: (i, 0)),
        ),
        compiler_params=pltpu.CompilerParams(
            dimension_semantics=("parallel",),   # megacore sharding on v7x
        ),
        cost_estimate=cost,
    )(xp, w_bd, b_bd)

    return out.reshape(n_pack, OUT_F)[:n]


def init_params(key):
    """Deterministic parameter init mirroring the module's __init__.

    fc_loc[0] (Linear(24, 48)): PyTorch-style uniform(-1/sqrt(24), 1/sqrt(24)).
    fc_loc[2] (Linear(48, 4)):  weight zeroed, bias = [0, 1, 0, 0].
    Weights are stored transposed, as (in, out).
    """
    k1, k2 = jax.random.split(key)
    bound1 = 1.0 / jnp.sqrt(jnp.float32(IN_F))
    w1 = jax.random.uniform(k1, (IN_F, HID_F), jnp.float32, -bound1, bound1)
    b1 = jax.random.uniform(k2, (HID_F,), jnp.float32, -bound1, bound1)
    w2 = jnp.zeros((HID_F, OUT_F), jnp.float32)
    b2 = jnp.array([0.0, 1.0, 0.0, 0.0], jnp.float32)
    return w1, b1, w2, b2


def reference_forward(x, w1, b1, w2, b2):
    """Pure-JAX reference of the original (unfolded) module math."""
    hi = lax.Precision.HIGHEST
    x2 = x.reshape(-1, IN_F).astype(jnp.float32)
    h = jnp.dot(x2, w1, precision=hi) + b1
    h = jnp.where(h >= 0.0, h, 1.0 * h)          # LeakyReLU(slope=1.0) == identity
    y = jnp.dot(h, w2, precision=hi) + b2
    return jnp.where(y >= 0.0, y, 1.0 * y)


if __name__ == "__main__":
    key = jax.random.PRNGKey(0)
    k_in, k_par, k_in2, k_w2, k_b2 = jax.random.split(key, 5)

    # Test 1: module-style init (fc_loc[2] weight zeroed, bias [0, 1, 0, 0]).
    x = jax.random.normal(k_in, (2, 4, IN_F), jnp.float32)
    w1, b1, w2, b2 = init_params(k_par)
    out = jax.block_until_ready(spatial_transform_forward(x, w1, b1, w2, b2))
    ref = reference_forward(x, w1, b1, w2, b2)
    assert out.shape == (8, OUT_F), out.shape
    assert jnp.allclose(out, ref, atol=1e-4, rtol=1e-4), "mismatch vs reference (test 1)"

    # Test 2: random second layer + row count not a multiple of 32
    # (exercises the folded matmul path, the packing pad, and a partial row tile).
    x_b = jax.random.normal(k_in2, (40, IN_F), jnp.float32)
    bound2 = 1.0 / jnp.sqrt(jnp.float32(HID_F))
    w2r = jax.random.uniform(k_w2, (HID_F, OUT_F), jnp.float32, -bound2, bound2)
    b2r = jax.random.uniform(k_b2, (OUT_F,), jnp.float32, -bound2, bound2)
    out2 = jax.block_until_ready(spatial_transform_forward(x_b, w1, b1, w2r, b2r))
    ref2 = reference_forward(x_b, w1, b1, w2r, b2r)
    assert out2.shape == (40, OUT_F), out2.shape
    assert jnp.allclose(out2, ref2, atol=1e-4, rtol=1e-4), "mismatch vs reference (test 2)"

    # Test 3: aligned multi-group batch (256 rows -> 8 packed rows, no padding path).
    x_c = jax.random.normal(k_in, (256, IN_F), jnp.float32)
    out3 = jax.block_until_ready(spatial_transform_forward(x_c, w1, b1, w2r, b2r))
    ref3 = reference_forward(x_c, w1, b1, w2r, b2r)
    assert out3.shape == (256, OUT_F), out3.shape
    assert jnp.allclose(out3, ref3, atol=1e-4, rtol=1e-4), "mismatch vs reference (test 3)"

    print("KERNEL_OK")
</pallas_src>

<mosaic_0001>
module attributes {stable_mosaic.version = 11 : i64} {
  func.func @_spatial_transform_kernel(%arg0: i32, %arg1: memref<1x768xf32, #tpu.memory_space<vmem>>, %arg2: memref<768x128xf32, #tpu.memory_space<vmem>>, %arg3: memref<1x128xf32, #tpu.memory_space<vmem>>, %arg4: memref<1x128xf32, #tpu.memory_space<vmem>>) attributes {dimension_semantics = [#tpu.dimension_semantics<parallel>], iteration_bounds = array<i64: 1>, scalar_prefetch = 0 : i64, scratch_operands = 0 : i64, tpu.core_type = #tpu.core_type<tc>, window_params = [{transform_indices = @transform_0, window_bounds = array<i64: 1, 768>}, {pipeline_mode = #tpu.pipeline_mode<synchronous>, transform_indices = @transform_1, window_bounds = array<i64: 768, 128>}, {pipeline_mode = #tpu.pipeline_mode<synchronous>, transform_indices = @transform_2, window_bounds = array<i64: 1, 128>}, {transform_indices = @transform_3, window_bounds = array<i64: 1, 128>}]} {
    %c0 = arith.constant 0 : index
    %c0_0 = arith.constant 0 : index
    %0 = vector.load %arg1[%c0, %c0_0] : memref<1x768xf32, #tpu.memory_space<vmem>>, vector<1x768xf32>
    %c0_1 = arith.constant 0 : index
    %c0_2 = arith.constant 0 : index
    %1 = vector.load %arg2[%c0_1, %c0_2] : memref<768x128xf32, #tpu.memory_space<vmem>>, vector<768x128xf32>
    %cst = arith.constant dense<0.000000e+00> : vector<1x128xf32>
    %2 = tpu.matmul %0, %1, %cst {dimension_numbers = #tpu.dot_dimension_numbers<[1], [0], [0], [1], [0, 0, 1, 1], [], []>} : vector<1x768xf32>, vector<768x128xf32>, vector<1x128xf32> -> vector<1x128xf32>
    %c0_3 = arith.constant 0 : index
    %c0_4 = arith.constant 0 : index
    %3 = vector.load %arg3[%c0_3, %c0_4] : memref<1x128xf32, #tpu.memory_space<vmem>>, vector<1x128xf32>
    %4 = arith.addf %2, %3 : vector<1x128xf32>
    %c0_5 = arith.constant 0 : index
    %c0_6 = arith.constant 0 : index
    %5 = vector.load %arg4[%c0_5, %c0_6] : memref<1x128xf32, #tpu.memory_space<vmem>>, vector<1x128xf32>
    tpu.vector_store %arg4[%c0_5, %c0_6], %4 {strides = array<i32>} : memref<1x128xf32, #tpu.memory_space<vmem>>, vector<1x128xf32>,
    return
  }
  func.func @transform_0(%arg0: i32) -> (i32, i32) {
    %c0_i32 = arith.constant 0 : i32
    %c0_i32_0 = arith.constant 0 : i32
    return %arg0, %c0_i32 : i32, i32
  }
  func.func @transform_1(%arg0: i32) -> (i32, i32) {
    %c0_i32 = arith.constant 0 : i32
    %c0_i32_0 = arith.constant 0 : i32
    %c0_i32_1 = arith.constant 0 : i32
    return %c0_i32, %c0_i32_0 : i32, i32
  }
  func.func @transform_2(%arg0: i32) -> (i32, i32) {
    %c0_i32 = arith.constant 0 : i32
    %c0_i32_0 = arith.constant 0 : i32
    %c0_i32_1 = arith.constant 0 : i32
    return %c0_i32, %c0_i32_0 : i32, i32
  }
  func.func @transform_3(%arg0: i32) -> (i32, i32) {
    %c0_i32 = arith.constant 0 : i32
    %c0_i32_0 = arith.constant 0 : i32
    return %arg0, %c0_i32 : i32, i32
  }
}

</mosaic_0001>

<llo_original>
// kernel: tile.8
$region0: #{tile.8}
  #allocation0 [shape = 's32[1]{0}', space=sflag, size = 0x4, scoped, tag = 'scoped memory for tile.8']
  %s0 = inlined_call_operand.vmem [shape: f32[4], index: 0, kind: input, shape index: {}]
  %s1 = inlined_call_operand.vmem [shape: f32[32,4], index: 1, kind: output, shape index: {}]
  // Predicated region
  $region2: #{tile.8} parent=0 // pred_check
    _
  $region3: #{tile.8} parent=0 // pred_check_branch
    %3 = sbr.rel (0) target = $region5
  $region4: #{tile.8} parent=0 // pred_region
    _
  $region5: #{tile.8} parent=0 // pred_fallthru
    _
  %v4 = vld [vmem:[%s0] ss:$0 sm:$0xff]
  %5 = vst [vmem:[%s1] sm:$0xff] %v4
  %s6 = scalar_lea.vmem %s1, 8
  %7 = vst [vmem:[%s6] sm:$0xff] %v4
  %s8 = scalar_lea.vmem %s1, 16
  %9 = vst [vmem:[%s8] sm:$0xff] %v4
  %s10 = scalar_lea.vmem %s1, 24
  %11 = vst [vmem:[%s10] sm:$0xff] %v4

// kernel: tile.9
$region0: #{tile.9}
  %s0 = inlined_call_operand.vmem [shape: f32[32,4], index: 0, kind: input, shape index: {}]
  %s1 = inlined_call_operand.vmem [shape: f32[1,128], index: 1, kind: output, shape index: {}]
  $region1: #{tile.9} parent=0
    #allocation0 [shape = 'u8[4096]{0}', space=vmem, size = 0x1000, scoped, tag = 'scoped mem for output reshape']
    %v2 = vld [vmem:[%s0] sm:$0x1]
    %vm3 = vcmask 31744
    %4 = vst.msk [vmem:[#allocation0] sm:$0x1] %vm3, %v2
    %s5 = scalar_lea.vmem %s0, 31
    %v6 = vld [vmem:[%s5] sm:$0x1]
    %7 = vrot.lane.b32.xlu0 %v6, 124
    %v8 = vpop.permute.xlu0 %7
    %vm9 = vcmask 1048544
    %10 = vst.msk [vmem:[#allocation0] sm:$0x1] %vm9, %v8
    %s11 = scalar_lea.vmem %s0, 30
    %v12 = vld [vmem:[%s11] sm:$0x1]
    %13 = vrot.lane.b32.xlu0 %v12, 120
    %v14 = vpop.permute.xlu0 %13
    %vm15 = vcmask 1015744
    %16 = vst.msk [vmem:[#allocation0] sm:$0x1] %vm15, %v14
    %s17 = scalar_lea.vmem %s0, 29
    %v18 = vld [vmem:[%s17] sm:$0x1]
    %19 = vrot.lane.b32.xlu0 %v18, 116
    %v20 = vpop.permute.xlu0 %19
    %vm21 = vcmask 982944
    %22 = vst.msk [vmem:[#allocation0] sm:$0x1] %vm21, %v20
    %s23 = scalar_lea.vmem %s0, 28
    %v24 = vld [vmem:[%s23] sm:$0x1]
    %25 = vrot.lane.b32.xlu0 %v24, 112
    %v26 = vpop.permute.xlu0 %25
    %vm27 = vcmask 950144
    %28 = vst.msk [vmem:[#allocation0] sm:$0x1] %vm27, %v26
    %s29 = scalar_lea.vmem %s0, 27
    %v30 = vld [vmem:[%s29] sm:$0x1]
    %31 = vrot.lane.b32.xlu0 %v30, 108
    %v32 = vpop.permute.xlu0 %31
    %vm33 = vcmask 917344
    %34 = vst.msk [vmem:[#allocation0] sm:$0x1] %vm33, %v32
    %s35 = scalar_lea.vmem %s0, 26
    %v36 = vld [vmem:[%s35] sm:$0x1]
    %37 = vrot.lane.b32.xlu0 %v36, 104
    %v38 = vpop.permute.xlu0 %37
    %vm39 = vcmask 884544
    %40 = vst.msk [vmem:[#allocation0] sm:$0x1] %vm39, %v38
    %s41 = scalar_lea.vmem %s0, 25
    %v42 = vld [vmem:[%s41] sm:$0x1]
    %43 = vrot.lane.b32.xlu0 %v42, 100
    %v44 = vpop.permute.xlu0 %43
    %vm45 = vcmask 851744
    %46 = vst.msk [vmem:[#allocation0] sm:$0x1] %vm45, %v44
    %s47 = scalar_lea.vmem %s0, 24
    %v48 = vld [vmem:[%s47] sm:$0x1]
    %49 = vrot.lane.b32.xlu0 %v48, 96
    %v50 = vpop.permute.xlu0 %49
    %vm51 = vcmask 818944
    %52 = vst.msk [vmem:[#allocation0] sm:$0x1] %vm51, %v50
    %s53 = scalar_lea.vmem %s0, 23
    %v54 = vld [vmem:[%s53] sm:$0x1]
    %55 = vrot.lane.b32.xlu0 %v54, 92
    %v56 = vpop.permute.xlu0 %55
    %vm57 = vcmask 786144
    %58 = vst.msk [vmem:[#allocation0] sm:$0x1] %vm57, %v56
    %s59 = scalar_lea.vmem %s0, 22
    %v60 = vld [vmem:[%s59] sm:$0x1]
    %61 = vrot.lane.b32.xlu0 %v60, 88
    %v62 = vpop.permute.xlu0 %61
    %vm63 = vcmask 753344
    %64 = vst.msk [vmem:[#allocation0] sm:$0x1] %vm63, %v62
    %s65 = scalar_lea.vmem %s0, 21
    %v66 = vld [vmem:[%s65] sm:$0x1]
    %67 = vrot.lane.b32.xlu0 %v66, 84
    %v68 = vpop.permute.xlu0 %67
    %vm69 = vcmask 720544
    %70 = vst.msk [vmem:[#allocation0] sm:$0x1] %vm69, %v68
    %s71 = scalar_lea.vmem %s0, 20
    %v72 = vld [vmem:[%s71] sm:$0x1]
    %73 = vrot.lane.b32.xlu0 %v72, 80
    %v74 = vpop.permute.xlu0 %73
    %vm75 = vcmask 687744
    %76 = vst.msk [vmem:[#allocation0] sm:$0x1] %vm75, %v74
    %s77 = scalar_lea.vmem %s0, 19
    %v78 = vld [vmem:[%s77] sm:$0x1]
    %79 = vrot.lane.b32.xlu0 %v78, 76
    %v80 = vpop.permute.xlu0 %79
    %vm81 = vcmask 654944
    %82 = vst.msk [vmem:[#allocation0] sm:$0x1] %vm81, %v80
    %s83 = scalar_lea.vmem %s0, 18
    %v84 = vld [vmem:[%s83] sm:$0x1]
    %85 = vrot.lane.b32.xlu0 %v84, 72
    %v86 = vpop.permute.xlu0 %85
    %vm87 = vcmask 622144
    %88 = vst.msk [vmem:[#allocation0] sm:$0x1] %vm87, %v86
    %s89 = scalar_lea.vmem %s0, 17
    %v90 = vld [vmem:[%s89] sm:$0x1]
    %91 = vrot.lane.b32.xlu0 %v90, 68
    %v92 = vpop.permute.xlu0 %91
    %vm93 = vcmask 589344
    %94 = vst.msk [vmem:[#allocation0] sm:$0x1] %vm93, %v92
    %s95 = scalar_lea.vmem %s0, 16
    %v96 = vld [vmem:[%s95] sm:$0x1]
    %97 = vrot.lane.b32.xlu0 %v96, 64
    %v98 = vpop.permute.xlu0 %97
    %vm99 = vcmask 556544
    %100 = vst.msk [vmem:[#allocation0] sm:$0x1] %vm99, %v98
    %s101 = scalar_lea.vmem %s0, 15
    %v102 = vld [vmem:[%s101] sm:$0x1]
    %103 = vrot.lane.b32.xlu0 %v102, 60
    %v104 = vpop.permute.xlu0 %103
    %vm105 = vcmask 523744
    %106 = vst.msk [vmem:[#allocation0] sm:$0x1] %vm105, %v104
    %s107 = scalar_lea.vmem %s0, 14
    %v108 = vld [vmem:[%s107] sm:$0x1]
    %109 = vrot.lane.b32.xlu0 %v108, 56
    %v110 = vpop.permute.xlu0 %109
    %vm111 = vcmask 490944
    %112 = vst.msk [vmem:[#allocation0] sm:$0x1] %vm111, %v110
    %s113 = scalar_lea.vmem %s0, 13
    %v114 = vld [vmem:[%s113] sm:$0x1]
    %115 = vrot.lane.b32.xlu0 %v114, 52
    %v116 = vpop.permute.xlu0 %115
    %vm117 = vcmask 458144
    %118 = vst.msk [vmem:[#allocation0] sm:$0x1] %vm117, %v116
    %s119 = scalar_lea.vmem %s0, 12
    %v120 = vld [vmem:[%s119] sm:$0x1]
    %121 = vrot.lane.b32.xlu0 %v120, 48
    %v122 = vpop.permute.xlu0 %121
    %vm123 = vcmask 425344
    %124 = vst.msk [vmem:[#allocation0] sm:$0x1] %vm123, %v122
    %s125 = scalar_lea.vmem %s0, 11
    %v126 = vld [vmem:[%s125] sm:$0x1]
    %127 = vrot.lane.b32.xlu0 %v126, 44
    %v128 = vpop.permute.xlu0 %127
    %vm129 = vcmask 392544
    %130 = vst.msk [vmem:[#allocation0] sm:$0x1] %vm129, %v128
    %s131 = scalar_lea.vmem %s0, 10
    %v132 = vld [vmem:[%s131] sm:$0x1]
    %133 = vrot.lane.b32.xlu0 %v132, 40
    %v134 = vpop.permute.xlu0 %133
    %vm135 = vcmask 359744
    %136 = vst.msk [vmem:[#allocation0] sm:$0x1] %vm135, %v134
    %s137 = scalar_lea.vmem %s0, 9
    %v138 = vld [vmem:[%s137] sm:$0x1]
    %139 = vrot.lane.b32.xlu0 %v138, 36
    %v140 = vpop.permute.xlu0 %139
    %vm141 = vcmask 326944
    %142 = vst.msk [vmem:[#allocation0] sm:$0x1] %vm141, %v140
    %s143 = scalar_lea.vmem %s0, 8
    %v144 = vld [vmem:[%s143] sm:$0x1]
    %145 = vrot.lane.b32.xlu0 %v144, 32
    %v146 = vpop.permute.xlu0 %145
    %vm147 = vcmask 294144
    %148 = vst.msk [vmem:[#allocation0] sm:$0x1] %vm147, %v146
    %s149 = scalar_lea.vmem %s0, 7
    %v150 = vld [vmem:[%s149] sm:$0x1]
    %151 = vrot.lane.b32.xlu0 %v150, 28
    %v152 = vpop.permute.xlu0 %151
    %vm153 = vcmask 261344
    %154 = vst.msk [vmem:[#allocation0] sm:$0x1] %vm153, %v152
    %s155 = scalar_lea.vmem %s0, 6
    %v156 = vld [vmem:[%s155] sm:$0x1]
    %157 = vrot.lane.b32.xlu0 %v156, 24
    %v158 = vpop.permute.xlu0 %157
    %vm159 = vcmask 228544
    %160 = vst.msk [vmem:[#allocation0] sm:$0x1] %vm159, %v158
    %s161 = scalar_lea.vmem %s0, 5
    %v162 = vld [vmem:[%s161] sm:$0x1]
    %163 = vrot.lane.b32.xlu0 %v162, 20
    %v164 = vpop.permute.xlu0 %163
    %vm165 = vcmask 195744
    %166 = vst.msk [vmem:[#allocation0] sm:$0x1] %vm165, %v164
    %s167 = scalar_lea.vmem %s0, 4
    %v168 = vld [vmem:[%s167] sm:$0x1]
    %169 = vrot.lane.b32.xlu0 %v168, 16
    %v170 = vpop.permute.xlu0 %169
    %vm171 = vcmask 162944
    %172 = vst.msk [vmem:[#allocation0] sm:$0x1] %vm171, %v170
    %s173 = scalar_lea.vmem %s0, 3
    %v174 = vld [vmem:[%s173] sm:$0x1]
    %175 = vrot.lane.b32.xlu0 %v174, 12
    %v176 = vpop.permute.xlu0 %175
    %vm177 = vcmask 130144
    %178 = vst.msk [vmem:[#allocation0] sm:$0x1] %vm177, %v176
    %s179 = scalar_lea.vmem %s0, 2
    %v180 = vld [vmem:[%s179] sm:$0x1]
    %181 = vrot.lane.b32.xlu0 %v180, 8
    %v182 = vpop.permute.xlu0 %181
    %vm183 = vcmask 97344
    %184 = vst.msk [vmem:[#allocation0] sm:$0x1] %vm183, %v182
    %s185 = scalar_lea.vmem %s0, 1
    %v186 = vld [vmem:[%s185] sm:$0x1]
    %187 = vrot.lane.b32.xlu0 %v186, 4
    %v188 = vpop.permute.xlu0 %187
    %vm189 = vcmask 64544
    %190 = vst.msk [vmem:[#allocation0] sm:$0x1] %vm189, %v188
    %s192 = sshllo.u32 0, 1
    %v194 = vld [vmem:[#allocation0] sm:%s192]
    %s195 = sshllo.u32 0, 1
    %196 = vst [vmem:[%s1] sm:%s195] %v194

// kernel: spatial_transform_forward.1
$region0: #{spatial_transform_forward.1}
  #allocation0 [shape = 'u32[]', space=smem, size = 0x4, offset = 0x4, fixed_abs, tag = 'smem constant byte address 0x4 - core index']
  #allocation1 [shape = 'u32[144,128]{1,0:T(1,128)}', space=vmem, size = 0x12000, scoped, tag = 'internal scratch']
  %s0 = inlined_call_operand.vmem [shape: f32[1,768], index: 0, kind: input, shape index: {}]
  %s1 = inlined_call_operand.vmem [shape: f32[768,128], index: 1, kind: input, shape index: {}]
  %s2 = inlined_call_operand.vmem [shape: f32[1,128], index: 2, kind: input, shape index: {}]
  %s3 = inlined_call_operand.vmem [shape: f32[1,128], index: 3, kind: output, shape index: {}]
  %s4 = sld [smem:[#allocation0]]
  $region22: #{spatial_transform_forward.1} parent=0
    _
  %s6 = ssub.s32 1, %s4
  %s7 = scalar_select 0, %s6, %s4
  // Predicated region
  $region2: #{spatial_transform_forward.1} parent=0 // pred_check
    _
  $region3: #{spatial_transform_forward.1} parent=0 // pred_check_branch
    %9 = sbr.rel (0) target = $region5
  $region4: #{spatial_transform_forward.1} parent=0 // pred_region
    _
  $region5: #{spatial_transform_forward.1} parent=0 // pred_fallthru
    _
  // Predicated region
  $region6: #{spatial_transform_forward.1} parent=0 // pred_check
    _
  $region7: #{spatial_transform_forward.1} parent=0 // pred_check_branch
    %11 = sbr.rel (0) target = $region9
  $region8: #{spatial_transform_forward.1} parent=0 // pred_region
    _
  $region9: #{spatial_transform_forward.1} parent=0 // pred_fallthru
    _
  // Predicated region
  $region10: #{spatial_transform_forward.1} parent=0 // pred_check
    _
  $region11: #{spatial_transform_forward.1} parent=0 // pred_check_branch
    %13 = sbr.rel (0) target = $region13
  $region12: #{spatial_transform_forward.1} parent=0 // pred_region
    _
  $region13: #{spatial_transform_forward.1} parent=0 // pred_fallthru
    _
  %v14 = vld [vmem:[%s0] sm:$0x3f]
  %v15 = vld [vmem:[%s1] sm:$0xff]
  %v16 = vld [vmem:[%s1 + $0x8] sm:$0xff]
  %v17 = vld [vmem:[%s1 + $0x10] sm:$0xff]
  %v18 = vld [vmem:[%s1 + $0x18] sm:$0xff]
  %v19 = vld [vmem:[%s1 + $0x20] sm:$0xff]
  %v20 = vld [vmem:[%s1 + $0x28] sm:$0xff]
  %v21 = vld [vmem:[%s1 + $0x30] sm:$0xff]
  %v22 = vld [vmem:[%s1 + $0x38] sm:$0xff]
  %v23 = vld [vmem:[%s1 + $0x40] sm:$0xff]
  %v24 = vld [vmem:[%s1 + $0x48] sm:$0xff]
  %v25 = vld [vmem:[%s1 + $0x50] sm:$0xff]
  %v26 = vld [vmem:[%s1 + $0x58] sm:$0xff]
  %v27 = vld [vmem:[%s1 + $0x60] sm:$0xff]
  %v28 = vld [vmem:[%s1 + $0x68] sm:$0xff]
  %v29 = vld [vmem:[%s1 + $0x70] sm:$0xff]
  %v30 = vld [vmem:[%s1 + $0x78] sm:$0xff]
  %v31 = vld [vmem:[%s1 + $0x80] sm:$0xff]
  %v32 = vld [vmem:[%s1 + $0x88] sm:$0xff]
  %v33 = vld [vmem:[%s1 + $0x90] sm:$0xff]
  %v34 = vld [vmem:[%s1 + $0x98] sm:$0xff]
  %v35 = vld [vmem:[%s1 + $0xa0] sm:$0xff]
  %v36 = vld [vmem:[%s1 + $0xa8] sm:$0xff]
  %v37 = vld [vmem:[%s1 + $0xb0] sm:$0xff]
  %v38 = vld [vmem:[%s1 + $0xb8] sm:$0xff]
  %v39 = vld [vmem:[%s1 + $0xc0] sm:$0xff]
  %v40 = vld [vmem:[%s1 + $0xc8] sm:$0xff]
  %v41 = vld [vmem:[%s1 + $0xd0] sm:$0xff]
  %v42 = vld [vmem:[%s1 + $0xd8] sm:$0xff]
  %v43 = vld [vmem:[%s1 + $0xe0] sm:$0xff]
  %v44 = vld [vmem:[%s1 + $0xe8] sm:$0xff]
  %v45 = vld [vmem:[%s1 + $0xf0] sm:$0xff]
  %v46 = vld [vmem:[%s1 + $0xf8] sm:$0xff]
  %v47 = vld [vmem:[%s1 + $0x100] sm:$0xff]
  %v48 = vld [vmem:[%s1 + $0x108] sm:$0xff]
  %v49 = vld [vmem:[%s1 + $0x110] sm:$0xff]
  %v50 = vld [vmem:[%s1 + $0x118] sm:$0xff]
  %v51 = vld [vmem:[%s1 + $0x120] sm:$0xff]
  %v52 = vld [vmem:[%s1 + $0x128] sm:$0xff]
  %v53 = vld [vmem:[%s1 + $0x130] sm:$0xff]
  %v54 = vld [vmem:[%s1 + $0x138] sm:$0xff]
  %v55 = vld [vmem:[%s1 + $0x140] sm:$0xff]
  %v56 = vld [vmem:[%s1 + $0x148] sm:$0xff]
  %v57 = vld [vmem:[%s1 + $0x150] sm:$0xff]
  %v58 = vld [vmem:[%s1 + $0x158] sm:$0xff]
  %v59 = vld [vmem:[%s1 + $0x160] sm:$0xff]
  %v60 = vld [vmem:[%s1 + $0x168] sm:$0xff]
  %v61 = vld [vmem:[%s1 + $0x170] sm:$0xff]
  %v62 = vld [vmem:[%s1 + $0x178] sm:$0xff]
  %v63 = vld [vmem:[%s1 + $0x180] sm:$0xff]
  %v64 = vld [vmem:[%s1 + $0x188] sm:$0xff]
  %v65 = vld [vmem:[%s1 + $0x190] sm:$0xff]
  %v66 = vld [vmem:[%s1 + $0x198] sm:$0xff]
  %v67 = vld [vmem:[%s1 + $0x1a0] sm:$0xff]
  %v68 = vld [vmem:[%s1 + $0x1a8] sm:$0xff]
  %v69 = vld [vmem:[%s1 + $0x1b0] sm:$0xff]
  %v70 = vld [vmem:[%s1 + $0x1b8] sm:$0xff]
  %v71 = vld [vmem:[%s1 + $0x1c0] sm:$0xff]
  %v72 = vld [vmem:[%s1 + $0x1c8] sm:$0xff]
  %v73 = vld [vmem:[%s1 + $0x1d0] sm:$0xff]
  %v74 = vld [vmem:[%s1 + $0x1d8] sm:$0xff]
  %v75 = vld [vmem:[%s1 + $0x1e0] sm:$0xff]
  %v76 = vld [vmem:[%s1 + $0x1e8] sm:$0xff]
  %v77 = vld [vmem:[%s1 + $0x1f0] sm:$0xff]
  %v78 = vld [vmem:[%s1 + $0x1f8] sm:$0xff]
  %v79 = vld [vmem:[%s1 + $0x200] sm:$0xff]
  %v80 = vld [vmem:[%s1 + $0x208] sm:$0xff]
  %v81 = vld [vmem:[%s1 + $0x210] sm:$0xff]
  %v82 = vld [vmem:[%s1 + $0x218] sm:$0xff]
  %v83 = vld [vmem:[%s1 + $0x220] sm:$0xff]
  %v84 = vld [vmem:[%s1 + $0x228] sm:$0xff]
  %v85 = vld [vmem:[%s1 + $0x230] sm:$0xff]
  %v86 = vld [vmem:[%s1 + $0x238] sm:$0xff]
  %v87 = vld [vmem:[%s1 + $0x240] sm:$0xff]
  %v88 = vld [vmem:[%s1 + $0x248] sm:$0xff]
  %v89 = vld [vmem:[%s1 + $0x250] sm:$0xff]
  %v90 = vld [vmem:[%s1 + $0x258] sm:$0xff]
  %v91 = vld [vmem:[%s1 + $0x260] sm:$0xff]
  %v92 = vld [vmem:[%s1 + $0x268] sm:$0xff]
  %v93 = vld [vmem:[%s1 + $0x270] sm:$0xff]
  %v94 = vld [vmem:[%s1 + $0x278] sm:$0xff]
  %v95 = vld [vmem:[%s1 + $0x280] sm:$0xff]
  %v96 = vld [vmem:[%s1 + $0x288] sm:$0xff]
  %v97 = vld [vmem:[%s1 + $0x290] sm:$0xff]
  %v98 = vld [vmem:[%s1 + $0x298] sm:$0xff]
  %v99 = vld [vmem:[%s1 + $0x2a0] sm:$0xff]
  %v100 = vld [vmem:[%s1 + $0x2a8] sm:$0xff]
  %v101 = vld [vmem:[%s1 + $0x2b0] sm:$0xff]
  %v102 = vld [vmem:[%s1 + $0x2b8] sm:$0xff]
  %v103 = vld [vmem:[%s1 + $0x2c0] sm:$0xff]
  %v104 = vld [vmem:[%s1 + $0x2c8] sm:$0xff]
  %v105 = vld [vmem:[%s1 + $0x2d0] sm:$0xff]
  %v106 = vld [vmem:[%s1 + $0x2d8] sm:$0xff]
  %v107 = vld [vmem:[%s1 + $0x2e0] sm:$0xff]
  %v108 = vld [vmem:[%s1 + $0x2e8] sm:$0xff]
  %v109 = vld [vmem:[%s1 + $0x2f0] sm:$0xff]
  %v110 = vld [vmem:[%s1 + $0x2f8] sm:$0xff]
  %v111 = vld [vmem:[%s2] sm:$0x1]
  %v113 = vlaneseq
  %v114 = vshrl.u32 %v113, 7
  %v115 = vsub.s32 0, %v114
  %v116 = vrot.slane %v14, %v115
  %v117 = vlaneseq
  %v118 = vshrl.u32 %v117, 7
  %v119 = vsub.s32 1, %v118
  %v120 = vrot.slane %v14, %v119
  %v121 = vlaneseq
  %v122 = vshrl.u32 %v121, 7
  %v123 = vsub.s32 2, %v122
  %v124 = vrot.slane %v14, %v123
  %v125 = vlaneseq
  %v126 = vshrl.u32 %v125, 7
  %v127 = vsub.s32 3, %v126
  %v128 = vrot.slane %v14, %v127
  %v129 = vlaneseq
  %v130 = vshrl.u32 %v129, 7
  %v131 = vsub.s32 4, %v130
  %v132 = vrot.slane %v14, %v131
  %v133 = vlaneseq
  %v134 = vshrl.u32 %v133, 7
  %v135 = vsub.s32 5, %v134
  %v136 = vrot.slane %v14, %v135
  %143 = vmatprep.subr.mxu0 0.0
  %144 = vmatpush1.msra.mxu0 %v15
  %145 = vmatprep.subr.mxu0 0.0
  %146 = vmatpush1.msra.mxu0 %v16
  %147 = vmatprep.subr.mxu0 0.0
  %148 = vmatpush1.msra.mxu0 %v17
  %149 = vmatprep.subr.mxu0 0.0
  %150 = vmatpush1.msra.mxu0 %v18
  %151 = vmatprep.subr.mxu0 0.0
  %152 = vmatpush1.msra.mxu0 %v19
  %153 = vmatprep.subr.mxu0 0.0
  %154 = vmatpush1.msra.mxu0 %v20
  %155 = vmatprep.subr.mxu0 0.0
  %156 = vmatpush1.msra.mxu0 %v21
  %157 = vmatprep.subr.mxu0 0.0
  %158 = vmatpush1.msra.mxu0 %v22
  %159 = vmatprep.subr.mxu0 0.0
  %160 = vmatpush1.msra.mxu0 %v23
  %161 = vmatprep.subr.mxu0 0.0
  %162 = vmatpush1.msra.mxu0 %v24
  %163 = vmatprep.subr.mxu0 0.0
  %164 = vmatpush1.msra.mxu0 %v25
  %165 = vmatprep.subr.mxu0 0.0
  %166 = vmatpush1.msra.mxu0 %v26
  %167 = vmatprep.subr.mxu0 0.0
  %168 = vmatpush1.msra.mxu0 %v27
  %169 = vmatprep.subr.mxu0 0.0
  %170 = vmatpush1.msra.mxu0 %v28
  %171 = vmatprep.subr.mxu0 0.0
  %172 = vmatpush1.msra.mxu0 %v29
  %173 = vmatprep.subr.mxu0 0.0
  %174 = vmatpush1.msra.mxu0 %v30
  %175 = vmatprep.subr.mxu0 0.0
  %176 = vmatpush1.msra.mxu0 %v31
  %177 = vmatprep.subr.mxu0 0.0
  %178 = vmatpush1.msra.mxu0 %v32
  %179 = vmatprep.subr.mxu0 0.0
  %180 = vmatpush1.msra.mxu0 %v33
  %181 = vmatprep.subr.mxu0 0.0
  %182 = vmatpush1.msra.mxu0 %v34
  %183 = vmatprep.subr.mxu0 0.0
  %184 = vmatpush1.msra.mxu0 %v35
  %185 = vmatprep.subr.mxu0 0.0
  %186 = vmatpush1.msra.mxu0 %v36
  %187 = vmatprep.subr.mxu0 0.0
  %188 = vmatpush1.msra.mxu0 %v37
  %189 = vmatprep.subr.mxu0 0.0
  %190 = vmatpush1.msra.mxu0 %v38
  %191 = vmatprep.subr.mxu0 0.0
  %192 = vmatpush1.msra.mxu0 %v39
  %193 = vmatprep.subr.mxu0 0.0
  %194 = vmatpush1.msra.mxu0 %v40
  %195 = vmatprep.subr.mxu0 0.0
  %196 = vmatpush1.msra.mxu0 %v41
  %197 = vmatprep.subr.mxu0 0.0
  %198 = vmatpush1.msra.mxu0 %v42
  %199 = vmatprep.subr.mxu0 0.0
  %200 = vmatpush1.msra.mxu0 %v43
  %201 = vmatprep.subr.mxu0 0.0
  %202 = vmatpush1.msra.mxu0 %v44
  %203 = vmatprep.subr.mxu0 0.0
  %204 = vmatpush1.msra.mxu0 %v45
  %205 = vmatprep.subr.mxu0 0.0
  %206 = vmatpush1.msra.mxu0 %v46
  %207 = vmatprep.mubr.f32.mxu0 %v120
  %208 = vmatmul.mubr.f32.gmra.mrb[0].mxu0 %v116
  %v209 = vpop.f32.mrb[0].mxu0
  %v210 = vadd.f32 %v111, %v209
  %v211 = vpop.f32.mrb[0].mxu0
  %212 = vdwg.mxu0
  %213 = vmatprep.subr.mxu0 0.0
  %214 = vmatpush1.msra.mxu0 %v47
  %215 = vmatprep.subr.mxu0 0.0
  %216 = vmatpush1.msra.mxu0 %v48
  %217 = vmatprep.subr.mxu0 0.0
  %218 = vmatpush1.msra.mxu0 %v49
  %219 = vmatprep.subr.mxu0 0.0
  %220 = vmatpush1.msra.mxu0 %v50
  %221 = vmatprep.subr.mxu0 0.0
  %222 = vmatpush1.msra.mxu0 %v51
  %223 = vmatprep.subr.mxu0 0.0
  %224 = vmatpush1.msra.mxu0 %v52
  %225 = vmatprep.subr.mxu0 0.0
  %226 = vmatpush1.msra.mxu0 %v53
  %227 = vmatprep.subr.mxu0 0.0
  %228 = vmatpush1.msra.mxu0 %v54
  %229 = vmatprep.subr.mxu0 0.0
  %230 = vmatpush1.msra.mxu0 %v55
  %231 = vmatprep.subr.mxu0 0.0
  %232 = vmatpush1.msra.mxu0 %v56
  %233 = vmatprep.subr.mxu0 0.0
  %234 = vmatpush1.msra.mxu0 %v57
  %235 = vmatprep.subr.mxu0 0.0
  %236 = vmatpush1.msra.mxu0 %v58
  %237 = vmatprep.subr.mxu0 0.0
  %238 = vmatpush1.msra.mxu0 %v59
  %239 = vmatprep.subr.mxu0 0.0
  %240 = vmatpush1.msra.mxu0 %v60
  %241 = vmatprep.subr.mxu0 0.0
  %242 = vmatpush1.msra.mxu0 %v61
  %243 = vmatprep.subr.mxu0 0.0
  %244 = vmatpush1.msra.mxu0 %v62
  %245 = vmatprep.subr.mxu0 0.0
  %246 = vmatpush1.msra.mxu0 %v63
  %247 = vmatprep.subr.mxu0 0.0
  %248 = vmatpush1.msra.mxu0 %v64
  %249 = vmatprep.subr.mxu0 0.0
  %250 = vmatpush1.msra.mxu0 %v65
  %251 = vmatprep.subr.mxu0 0.0
  %252 = vmatpush1.msra.mxu0 %v66
  %253 = vmatprep.subr.mxu0 0.0
  %254 = vmatpush1.msra.mxu0 %v67
  %255 = vmatprep.subr.mxu0 0.0
  %256 = vmatpush1.msra.mxu0 %v68
  %257 = vmatprep.subr.mxu0 0.0
  %258 = vmatpush1.msra.mxu0 %v69
  %259 = vmatprep.subr.mxu0 0.0
  %260 = vmatpush1.msra.mxu0 %v70
  %261 = vmatprep.subr.mxu0 0.0
  %262 = vmatpush1.msra.mxu0 %v71
  %263 = vmatprep.subr.mxu0 0.0
  %264 = vmatpush1.msra.mxu0 %v72
  %265 = vmatprep.subr.mxu0 0.0
  %266 = vmatpush1.msra.mxu0 %v73
  %267 = vmatprep.subr.mxu0 0.0
  %268 = vmatpush1.msra.mxu0 %v74
  %269 = vmatprep.subr.mxu0 0.0
  %270 = vmatpush1.msra.mxu0 %v75
  %271 = vmatprep.subr.mxu0 0.0
  %272 = vmatpush1.msra.mxu0 %v76
  %273 = vmatprep.subr.mxu0 0.0
  %274 = vmatpush1.msra.mxu0 %v77
  %275 = vmatprep.subr.mxu0 0.0
  %276 = vmatpush1.msra.mxu0 %v78
  %277 = vmatprep.mubr.f32.mxu0 %v128
  %278 = vmatmul.mubr.f32.gmra.mrb[0].mxu0 %v124
  %v279 = vpop.f32.mrb[0].mxu0
  %v280 = vadd.f32 %v210, %v279
  %v281 = vpop.f32.mrb[0].mxu0
  %282 = vdwg.mxu0
  %283 = vmatprep.subr.mxu0 0.0
  %284 = vmatpush1.msra.mxu0 %v79
  %285 = vmatprep.subr.mxu0 0.0
  %286 = vmatpush1.msra.mxu0 %v80
  %287 = vmatprep.subr.mxu0 0.0
  %288 = vmatpush1.msra.mxu0 %v81
  %289 = vmatprep.subr.mxu0 0.0
  %290 = vmatpush1.msra.mxu0 %v82
  %291 = vmatprep.subr.mxu0 0.0
  %292 = vmatpush1.msra.mxu0 %v83
  %293 = vmatprep.subr.mxu0 0.0
  %294 = vmatpush1.msra.mxu0 %v84
  %295 = vmatprep.subr.mxu0 0.0
  %296 = vmatpush1.msra.mxu0 %v85
  %297 = vmatprep.subr.mxu0 0.0
  %298 = vmatpush1.msra.mxu0 %v86
  %299 = vmatprep.subr.mxu0 0.0
  %300 = vmatpush1.msra.mxu0 %v87
  %301 = vmatprep.subr.mxu0 0.0
  %302 = vmatpush1.msra.mxu0 %v88
  %303 = vmatprep.subr.mxu0 0.0
  %304 = vmatpush1.msra.mxu0 %v89
  %305 = vmatprep.subr.mxu0 0.0
  %306 = vmatpush1.msra.mxu0 %v90
  %307 = vmatprep.subr.mxu0 0.0
  %308 = vmatpush1.msra.mxu0 %v91
  %309 = vmatprep.subr.mxu0 0.0
  %310 = vmatpush1.msra.mxu0 %v92
  %311 = vmatprep.subr.mxu0 0.0
  %312 = vmatpush1.msra.mxu0 %v93
  %313 = vmatprep.subr.mxu0 0.0
  %314 = vmatpush1.msra.mxu0 %v94
  %315 = vmatprep.subr.mxu0 0.0
  %316 = vmatpush1.msra.mxu0 %v95
  %317 = vmatprep.subr.mxu0 0.0
  %318 = vmatpush1.msra.mxu0 %v96
  %319 = vmatprep.subr.mxu0 0.0
  %320 = vmatpush1.msra.mxu0 %v97
  %321 = vmatprep.subr.mxu0 0.0
  %322 = vmatpush1.msra.mxu0 %v98
  %323 = vmatprep.subr.mxu0 0.0
  %324 = vmatpush1.msra.mxu0 %v99
  %325 = vmatprep.subr.mxu0 0.0
  %326 = vmatpush1.msra.mxu0 %v100
  %327 = vmatprep.subr.mxu0 0.0
  %328 = vmatpush1.msra.mxu0 %v101
  %329 = vmatprep.subr.mxu0 0.0
  %330 = vmatpush1.msra.mxu0 %v102
  %331 = vmatprep.subr.mxu0 0.0
  %332 = vmatpush1.msra.mxu0 %v103
  %333 = vmatprep.subr.mxu0 0.0
  %334 = vmatpush1.msra.mxu0 %v104
  %335 = vmatprep.subr.mxu0 0.0
  %336 = vmatpush1.msra.mxu0 %v105
  %337 = vmatprep.subr.mxu0 0.0
  %338 = vmatpush1.msra.mxu0 %v106
  %339 = vmatprep.subr.mxu0 0.0
  %340 = vmatpush1.msra.mxu0 %v107
  %341 = vmatprep.subr.mxu0 0.0
  %342 = vmatpush1.msra.mxu0 %v108
  %343 = vmatprep.subr.mxu0 0.0
  %344 = vmatpush1.msra.mxu0 %v109
  %345 = vmatprep.subr.mxu0 0.0
  %346 = vmatpush1.msra.mxu0 %v110
  %347 = vmatprep.mubr.f32.mxu0 %v136
  %348 = vmatmul.mubr.f32.gmra.mrb[0].mxu0 %v132
  %v349 = vpop.f32.mrb[0].mxu0
  %v350 = vadd.f32 %v280, %v349
  %v351 = vpop.f32.mrb[0].mxu0
  %352 = vdwg.mxu0
  %353 = vst [vmem:[%s3] sm:$0x1] %v350
  // Predicated region
  $region14: #{spatial_transform_forward.1} parent=0 // pred_check
    _
  $region15: #{spatial_transform_forward.1} parent=0 // pred_check_branch
    %355 = sbr.rel (0) target = $region17
  $region16: #{spatial_transform_forward.1} parent=0 // pred_region
    _
  $region17: #{spatial_transform_forward.1} parent=0 // pred_fallthru
    _
  // Predicated region
  $region18: #{spatial_transform_forward.1} parent=0 // pred_check
    _
  $region19: #{spatial_transform_forward.1} parent=0 // pred_check_branch
    %357 = sbr.rel (0) target = $region21
  $region20: #{spatial_transform_forward.1} parent=0 // pred_region
    _
  $region21: #{spatial_transform_forward.1} parent=0 // pred_fallthru
    _

</llo_original>
